<compile_context>
chip_gen: v7x
topology: tpu7x:2x2x1
jax: 0.10.0
libtpu: 0.0.40
codegen_flags: <defaults>
</compile_context>

<pallas_src>
import math
from functools import partial

import jax
import jax.numpy as jnp
from jax import lax
from jax.experimental import pallas as pl
from jax.experimental.pallas import tpu as pltpu


def _round_up(x, m):
    return ((x + m - 1) // m) * m


def _cdiv(a, b):
    return (a + b - 1) // b


# Keep the whole (K, OC) perturbed-weight matrix VMEM-resident below this size;
# above it, stream K in MXU-sized chunks with an f32 accumulator.
_KERN_RESIDENT_BYTES = 6 * 1024 * 1024
_KERN_TILE_BYTES = 4 * 1024 * 1024


# ---------------------------------------------------------------------------
# Generation-aware VMEM sizing (v5e/v6e: 128 MiB physical, v7x: 64 MiB per TC).
# ---------------------------------------------------------------------------
def _vmem_params():
    try:
        cap = int(pltpu.get_tpu_info().vmem_capacity_bytes)
    except Exception:
        cap = 64 * 1024 * 1024  # conservative: v7x per-TC VMEM
    if cap >= 128 * 1024 * 1024:                       # v5e / v6e
        return 64 * 1024 * 1024, 100 * 1024 * 1024     # (tile budget, vmem_limit_bytes)
    return 40 * 1024 * 1024, 48 * 1024 * 1024          # v7x


# ---------------------------------------------------------------------------
# Probe: is pl.BlockSpec(pipeline_mode=pl.Buffered(1)) supported on this jax/TPU?
# (single-buffered, constant-index-map resident weights; falls back cleanly.)
# ---------------------------------------------------------------------------
_BUFFERED_OK = None


def _buffered_weights_supported():
    global _BUFFERED_OK
    if _BUFFERED_OK is None:
        try:
            spec = pl.BlockSpec((8, 128), lambda i: (0, 0),
                                pipeline_mode=pl.Buffered(1))

            def _probe_kernel(a_ref, o_ref):
                o_ref[...] = a_ref[...] + 1.0

            out = pl.pallas_call(
                _probe_kernel,
                out_shape=jax.ShapeDtypeStruct((8, 128), jnp.float32),
                grid=(1,),
                in_specs=[spec],
                out_specs=pl.BlockSpec((8, 128), lambda i: (0, 0)),
            )(jnp.zeros((8, 128), jnp.float32))
            jax.block_until_ready(out)
            _BUFFERED_OK = True
        except Exception:
            _BUFFERED_OK = False
    return _BUFFERED_OK


# ---------------------------------------------------------------------------
# Pallas kernel: one (M-tile, K-tile) step of   out = patches @ kern + bias
#   patches_ref : (TM, TK)   bf16 or f32
#   kern_ref    : (TK, OCn)  bf16 or f32   (W * eps, pre-folded in the wrapper)
#   bias_ref    : (1, OCn)   f32
#   o_ref       : (TM, OCn)  f32
#   acc_ref     : (TM, OCn)  f32 VMEM scratch (persists across the K axis)
# ---------------------------------------------------------------------------
def _conv_var_unif_kernel(patches_ref, kern_ref, bias_ref, o_ref, acc_ref):
    k = pl.program_id(1)

    @pl.when(k == 0)
    def _init():
        acc_ref[...] = jnp.zeros_like(acc_ref)

    # MXU matmul with f32 accumulation.  Default MXU precision (bf16 passes) is used;
    # the test tolerances below account for it.
    acc_ref[...] += jnp.dot(patches_ref[...], kern_ref[...],
                            preferred_element_type=jnp.float32)

    @pl.when(k == pl.num_programs(1) - 1)
    def _store():
        o_ref[...] = (acc_ref[...] + bias_ref[...]).astype(o_ref.dtype)


def _conv_var_unif_matmul(patches, kern, bias, *, nk, tile_m_cap=2048,
                          buffered_weights=False):
    """out[M, OCn] = patches[M, Kp] @ kern[Kp, OCn] + bias[1, OCn].

    Grid = (M tiles [parallel], K tiles [arbitrary reduction w/ f32 accumulator]).
    """
    M, Kp = patches.shape
    Kp2, OCn = kern.shape
    assert Kp == Kp2 and Kp % nk == 0
    tk = Kp // nk
    in_item = patches.dtype.itemsize
    out_dtype = jnp.float32
    out_item = jnp.dtype(out_dtype).itemsize

    budget, vmem_limit = _vmem_params()

    # Single-buffer the resident (constant-index-map) operands when supported; when
    # K is tiled the kern blocks actually stream, so keep default double-buffering.
    buffer_kern = buffered_weights and nk == 1
    buffer_bias = buffered_weights

    kern_bufs = 1 if buffer_kern else 2
    bias_bufs = 1 if buffer_bias else 2
    resident = kern_bufs * tk * OCn * in_item + bias_bufs * OCn * 4
    per_row = (2 * tk * in_item          # double-buffered patches tile
               + 2 * OCn * out_item      # double-buffered output tile
               + OCn * 4)                # f32 accumulator scratch
    lane_align = 16 if in_item < 4 else 8

    tm = (budget - resident) // per_row
    tm = int(max(lane_align, min(tm, tile_m_cap)))
    if tm >= 512:
        tm = (tm // 256) * 256
    elif tm >= 128:
        tm = (tm // 128) * 128
    else:
        tm = max(lane_align, (tm // lane_align) * lane_align)
    if tm >= M:
        # Keep at least 2 grid steps over M so both v7x TensorCores get work.
        half = _cdiv(M, 2)
        align2 = 128 if half >= 128 else lane_align
        tm = max(lane_align, _round_up(half, align2))
    tm = int(tm)

    grid = (_cdiv(M, tm), nk)

    kern_kwargs = dict(pipeline_mode=pl.Buffered(1)) if buffer_kern else {}
    bias_kwargs = dict(pipeline_mode=pl.Buffered(1)) if buffer_bias else {}

    flops = 2 * M * Kp * OCn
    bytes_accessed = (M * Kp * in_item + Kp * OCn * in_item
                      + OCn * 4 + M * OCn * out_item)

    return pl.pallas_call(
        _conv_var_unif_kernel,
        out_shape=jax.ShapeDtypeStruct((M, OCn), out_dtype),
        grid=grid,
        in_specs=[
            pl.BlockSpec((tm, tk), lambda i, k: (i, k)),                    # streamed rows
            pl.BlockSpec((tk, OCn), lambda i, k: (k, 0), **kern_kwargs),    # weights
            pl.BlockSpec((1, OCn), lambda i, k: (0, 0), **bias_kwargs),     # bias
        ],
        out_specs=pl.BlockSpec((tm, OCn), lambda i, k: (i, 0)),
        scratch_shapes=[pltpu.VMEM((tm, OCn), jnp.float32)],
        compiler_params=pltpu.CompilerParams(
            dimension_semantics=("parallel", "arbitrary"),
            vmem_limit_bytes=int(vmem_limit)),
        cost_estimate=pl.CostEstimate(flops=int(flops), transcendentals=0,
                                      bytes_accessed=int(bytes_accessed)),
    )(patches, kern, bias)


# ---------------------------------------------------------------------------
# im2col: (N, C, H, W) -> (N*OH*OW, C*KH*KW), feature order (C, KH, KW) which matches
# PyTorch OIHW weights flattened to (OC, C*KH*KW).  Pure copy -> exact values.
# ---------------------------------------------------------------------------
def _im2col(x, kh, kw, stride, padding, dilation):
    patches = lax.conv_general_dilated_patches(
        x,
        filter_shape=(kh, kw),
        window_strides=(stride, stride),
        padding=[(padding, padding), (padding, padding)],
        rhs_dilation=(dilation, dilation),
        dimension_numbers=("NCHW", "OIHW", "NHWC"),
        precision=lax.Precision.HIGHEST)
    N, OH, OW, K = patches.shape
    return patches.reshape(N * OH * OW, K), OH, OW


# ---------------------------------------------------------------------------
# Whole forward pass under one jit: eps draw, im2col, Pallas GEMM, layout fixup.
# ---------------------------------------------------------------------------
@partial(jax.jit, static_argnames=("kh", "kw", "stride", "padding", "dilation",
                                   "rounding", "use_bf16", "out_layout",
                                   "buffered_weights"))
def _conv_var_unif_forward(x, W, bias, eps_key, *, kh, kw, stride, padding, dilation,
                           rounding, use_bf16, out_layout, buffered_weights):
    OC, C = W.shape[0], W.shape[1]
    # eps ~ U(0,1) - 0.5, same shape as W   (torch.rand(W.size()) - 0.5)
    eps = jax.random.uniform(eps_key, W.shape, dtype=jnp.float32) - 0.5
    if rounding:
        eps = jnp.round(eps * rounding) / rounding

    # bf16 im2col: patch extraction is a pure copy, so casting x first halves the
    # dominant HBM stream without changing values beyond the bf16 rounding of x.
    x_mm = x.astype(jnp.bfloat16) if use_bf16 else x

    patches, OH, OW = _im2col(x_mm, kh, kw, stride, padding, dilation)
    M, K = patches.shape
    in_item = 2 if use_bf16 else 4

    # OC (lane) padding only when OC is already >= 128; for small OC the padded f32
    # writeback would dominate HBM traffic (masked narrow stores are the cheaper evil).
    OCn = _round_up(OC, 128) if OC >= 128 else OC

    # K tiling plan: keep the perturbed weights fully VMEM-resident when small,
    # otherwise stream K in 256-wide (MXU-sized) chunks.
    if K * OCn * in_item <= _KERN_RESIDENT_BYTES:
        tk, nk, Kp = K, 1, K                    # full-extent K block: no patches pad
    else:
        tk = max(256, (_KERN_TILE_BYTES // (OCn * in_item)) // 256 * 256)
        Kp = _round_up(K, tk)
        nk = Kp // tk

    kern = (W * eps).astype(jnp.float32).reshape(OC, K).T      # (K, OC), eps folded once
    if Kp != K or OCn != OC:
        kern = jnp.pad(kern, ((0, Kp - K), (0, OCn - OC)))
    if bias is not None:
        bias2d = bias.reshape(1, OC).astype(jnp.float32)
        if OCn != OC:
            bias2d = jnp.pad(bias2d, ((0, 0), (0, OCn - OC)))
    else:
        bias2d = jnp.zeros((1, OCn), jnp.float32)
    if use_bf16:
        kern = kern.astype(jnp.bfloat16)
    if Kp != K:                                  # only when K-tiling is active
        patches = jnp.pad(patches, ((0, 0), (0, Kp - K)))

    out2d = _conv_var_unif_matmul(patches, kern, bias2d, nk=nk,
                                  buffered_weights=buffered_weights)   # (M, OCn) f32
    if OCn != OC:
        out2d = out2d[:, :OC]

    N = x.shape[0]
    out_nhwc = out2d.reshape(N, OH, OW, OC)
    if out_layout == "NHWC":
        return out_nhwc, eps
    return out_nhwc.transpose(0, 3, 1, 2), eps   # NCHW to match the PyTorch module


class ConvVarianceUnifPallas:
    """JAX/Pallas port of ConvVarianceUnif.forward (training/eval are identical math)."""

    def __init__(self, in_channels, out_channels, kernel_size,
                 stride=1, padding=0, dilation=1, bias=True, rounding=0,
                 key=None, use_bf16=True, out_layout="NCHW"):
        self.in_channels = in_channels
        self.out_channels = out_channels
        self.kernel_size = (kernel_size, kernel_size)
        self.stride = stride
        self.padding = padding
        self.dilation = dilation
        self.rounding = rounding
        self.use_bf16 = use_bf16            # bf16 MXU inputs / f32 accumulate (all gens)
        self.out_layout = out_layout        # "NCHW" (PyTorch parity) or "NHWC"
        self._buffered_weights = _buffered_weights_supported()
        if key is None:
            key = jax.random.PRNGKey(0)
        kw_key, kb_key = jax.random.split(key)
        n = in_channels * kernel_size * kernel_size
        stdv = 1.0 / math.sqrt(n)
        # deterministic "uniform_(-stdv, stdv)" init
        self.W = jax.random.uniform(
            kw_key, (out_channels, in_channels, kernel_size, kernel_size),
            minval=-stdv, maxval=stdv, dtype=jnp.float32)
        if bias:
            self.bias = jax.random.uniform(
                kb_key, (1, out_channels, 1, 1),
                minval=-stdv, maxval=stdv, dtype=jnp.float32)
        else:
            self.bias = None

    def __call__(self, x, eps_key):
        return _conv_var_unif_forward(
            x, self.W, self.bias, eps_key,
            kh=self.kernel_size[0], kw=self.kernel_size[1],
            stride=self.stride, padding=self.padding, dilation=self.dilation,
            rounding=self.rounding, use_bf16=self.use_bf16,
            out_layout=self.out_layout, buffered_weights=self._buffered_weights)


def _reference_conv(x, kern_oihw, bias, stride, padding, dilation):
    out = lax.conv_general_dilated(
        x, kern_oihw,
        window_strides=(stride, stride),
        padding=[(padding, padding), (padding, padding)],
        rhs_dilation=(dilation, dilation),
        dimension_numbers=("NCHW", "OIHW", "NCHW"),
        precision=lax.Precision.HIGHEST)
    if bias is not None:
        out = out + bias
    return out


if __name__ == "__main__":
    key = jax.random.PRNGKey(0)
    k_param, k_x, k_eps, k_param2, k_x2, k_eps2 = jax.random.split(key, 6)

    # --- config 1: 3x3, stride 1, pad 1, bias, square input ------------------
    N, C_in, H, W = 2, 4, 16, 16
    C_out, ksize, stride, padding, dilation = 8, 3, 1, 1, 1
    x = jax.random.normal(k_x, (N, C_in, H, W), dtype=jnp.float32)

    mod = ConvVarianceUnifPallas(C_in, C_out, ksize, stride=stride, padding=padding,
                                 dilation=dilation, bias=True, rounding=0,
                                 key=k_param, use_bf16=True)
    out, eps = mod(x, k_eps)
    out = jax.block_until_ready(out)

    ref = _reference_conv(x, mod.W * eps, mod.bias, stride, padding, dilation)
    assert out.shape == ref.shape == (N, C_out, H, W)
    # bf16 MXU inputs / f32 accumulate -> loose tolerance vs HIGHEST-precision reference.
    assert jnp.allclose(out, ref, atol=5e-2, rtol=5e-2), "bf16 path mismatch vs XLA conv"

    # f32-input path (default MXU precision inside the kernel; tolerance documents it).
    mod_f32 = ConvVarianceUnifPallas(C_in, C_out, ksize, stride=stride, padding=padding,
                                     dilation=dilation, bias=True, rounding=0,
                                     key=k_param, use_bf16=False)
    out_f32, eps_f32 = mod_f32(x, k_eps)
    out_f32 = jax.block_until_ready(out_f32)
    ref_f32 = _reference_conv(x, mod_f32.W * eps_f32, mod_f32.bias, stride, padding, dilation)
    assert jnp.allclose(out_f32, ref_f32, atol=2e-2, rtol=2e-2), "f32 path mismatch vs XLA conv"

    # --- config 2: stride 2, dilation 2, pad 2, no bias, non-square input ----
    # (validates the im2col feature ordering beyond the stride-1/dilation-1 case)
    N2, C_in2, H2, W2 = 2, 3, 13, 11
    C_out2, ksize2, stride2, padding2, dilation2 = 5, 3, 2, 2, 2
    x2 = jax.random.normal(k_x2, (N2, C_in2, H2, W2), dtype=jnp.float32)

    mod2 = ConvVarianceUnifPallas(C_in2, C_out2, ksize2, stride=stride2, padding=padding2,
                                  dilation=dilation2, bias=False, rounding=4,
                                  key=k_param2, use_bf16=True)
    out2, eps2 = mod2(x2, k_eps2)
    out2 = jax.block_until_ready(out2)
    ref2 = _reference_conv(x2, mod2.W * eps2, None, stride2, padding2, dilation2)
    assert out2.shape == ref2.shape
    assert jnp.allclose(out2, ref2, atol=5e-2, rtol=5e-2), "strided/dilated mismatch vs XLA conv"

    print("KERNEL_OK")
</pallas_src>

<mosaic_0001>
module attributes {stable_mosaic.version = 11 : i64} {
  func.func @_probe_kernel(%arg0: i32, %arg1: memref<8x128xf32, #tpu.memory_space<vmem>>, %arg2: memref<8x128xf32, #tpu.memory_space<vmem>>) attributes {dimension_semantics = [#tpu.dimension_semantics<arbitrary>], iteration_bounds = array<i64: 1>, scalar_prefetch = 0 : i64, scratch_operands = 0 : i64, tpu.core_type = #tpu.core_type<tc>, window_params = [{pipeline_mode = #tpu.pipeline_mode<synchronous>, transform_indices = @transform_0, window_bounds = array<i64: 8, 128>}, {pipeline_mode = #tpu.pipeline_mode<synchronous>, transform_indices = @transform_1, window_bounds = array<i64: 8, 128>}]} {
    %c0 = arith.constant 0 : index
    %c0_0 = arith.constant 0 : index
    %0 = vector.load %arg1[%c0, %c0_0] : memref<8x128xf32, #tpu.memory_space<vmem>>, vector<8x128xf32>
    %cst = arith.constant 1.000000e+00 : f32
    %1 = vector.broadcast %cst : f32 to vector<8x128xf32>
    %2 = arith.addf %0, %1 : vector<8x128xf32>
    %c0_1 = arith.constant 0 : index
    %c0_2 = arith.constant 0 : index
    %3 = vector.load %arg2[%c0_1, %c0_2] : memref<8x128xf32, #tpu.memory_space<vmem>>, vector<8x128xf32>
    tpu.vector_store %arg2[%c0_1, %c0_2], %2 {strides = array<i32>} : memref<8x128xf32, #tpu.memory_space<vmem>>, vector<8x128xf32>,
    return
  }
  func.func @transform_0(%arg0: i32) -> (i32, i32) {
    %c0_i32 = arith.constant 0 : i32
    %c0_i32_0 = arith.constant 0 : i32
    %c0_i32_1 = arith.constant 0 : i32
    return %c0_i32, %c0_i32_0 : i32, i32
  }
  func.func @transform_1(%arg0: i32) -> (i32, i32) {
    %c0_i32 = arith.constant 0 : i32
    %c0_i32_0 = arith.constant 0 : i32
    %c0_i32_1 = arith.constant 0 : i32
    return %c0_i32, %c0_i32_0 : i32, i32
  }
}

module attributes {stable_mosaic.version = 11 : i64} {
  func.func @_conv_var_unif_kernel(%arg0: i32, %arg1: i32, %arg2: memref<256x36xbf16, #tpu.memory_space<vmem>>, %arg3: memref<36x8xbf16, #tpu.memory_space<vmem>>, %arg4: memref<1x8xf32, #tpu.memory_space<vmem>>, %arg5: memref<256x8xf32, #tpu.memory_space<vmem>>, %arg6: memref<256x8xf32, #tpu.memory_space<vmem>>) attributes {dimension_semantics = [#tpu.dimension_semantics<parallel>, #tpu.dimension_semantics<arbitrary>], iteration_bounds = array<i64: 2, 1>, scalar_prefetch = 0 : i64, scratch_operands = 1 : i64, tpu.core_type = #tpu.core_type<tc>, window_params = [{transform_indices = @transform_0, window_bounds = array<i64: 256, 36>}, {transform_indices = @transform_1, window_bounds = array<i64: 36, 8>}, {pipeline_mode = #tpu.pipeline_mode<synchronous>, transform_indices = @transform_2, window_bounds = array<i64: 1, 8>}, {transform_indices = @transform_3, window_bounds = array<i64: 256, 8>}]} {
    %c0_i32 = arith.constant 0 : i32
    %0 = arith.cmpi eq, %arg1, %c0_i32 : i32
    %1 = arith.extui %0 : i1 to i32
    %c0_i32_0 = arith.constant 0 : i32
    %2 = arith.cmpi ne, %1, %c0_i32_0 : i32
    scf.if %2 {
      %cst_10 = arith.constant 0.000000e+00 : f32
      %12 = vector.broadcast %cst_10 : f32 to vector<256x8xf32>
      %c0_11 = arith.constant 0 : index
      %c0_12 = arith.constant 0 : index
      %13 = vector.load %arg6[%c0_11, %c0_12] : memref<256x8xf32, #tpu.memory_space<vmem>>, vector<256x8xf32>
      tpu.vector_store %arg6[%c0_11, %c0_12], %12 {strides = array<i32>} : memref<256x8xf32, #tpu.memory_space<vmem>>, vector<256x8xf32>,
    } else {
    }
    %c0 = arith.constant 0 : index
    %c0_1 = arith.constant 0 : index
    %3 = vector.load %arg6[%c0, %c0_1] : memref<256x8xf32, #tpu.memory_space<vmem>>, vector<256x8xf32>
    %c0_2 = arith.constant 0 : index
    %c0_3 = arith.constant 0 : index
    %4 = vector.load %arg2[%c0_2, %c0_3] : memref<256x36xbf16, #tpu.memory_space<vmem>>, vector<256x36xbf16>
    %c0_4 = arith.constant 0 : index
    %c0_5 = arith.constant 0 : index
    %5 = vector.load %arg3[%c0_4, %c0_5] : memref<36x8xbf16, #tpu.memory_space<vmem>>, vector<36x8xbf16>
    %cst = arith.constant dense<0.000000e+00> : vector<256x8xf32>
    %6 = tpu.matmul %4, %5, %cst {dimension_numbers = #tpu.dot_dimension_numbers<[1], [0], [0], [1], [0, 0, 1, 1], [], []>} : vector<256x36xbf16>, vector<36x8xbf16>, vector<256x8xf32> -> vector<256x8xf32>
    %7 = arith.addf %3, %6 : vector<256x8xf32>
    %c0_6 = arith.constant 0 : index
    %c0_7 = arith.constant 0 : index
    %8 = vector.load %arg6[%c0_6, %c0_7] : memref<256x8xf32, #tpu.memory_space<vmem>>, vector<256x8xf32>
    tpu.vector_store %arg6[%c0_6, %c0_7], %7 {strides = array<i32>} : memref<256x8xf32, #tpu.memory_space<vmem>>, vector<256x8xf32>,
    %c0_i32_8 = arith.constant 0 : i32
    %9 = arith.cmpi eq, %arg1, %c0_i32_8 : i32
    %10 = arith.extui %9 : i1 to i32
    %c0_i32_9 = arith.constant 0 : i32
    %11 = arith.cmpi ne, %10, %c0_i32_9 : i32
    scf.if %11 {
      %c0_10 = arith.constant 0 : index
      %c0_11 = arith.constant 0 : index
      %12 = vector.load %arg6[%c0_10, %c0_11] : memref<256x8xf32, #tpu.memory_space<vmem>>, vector<256x8xf32>
      %c0_12 = arith.constant 0 : index
      %c0_13 = arith.constant 0 : index
      %13 = vector.load %arg4[%c0_12, %c0_13] : memref<1x8xf32, #tpu.memory_space<vmem>>, vector<1x8xf32>
      %14 = vector.broadcast %13 : vector<1x8xf32> to vector<256x8xf32>
      %15 = arith.addf %12, %14 : vector<256x8xf32>
      %c0_14 = arith.constant 0 : index
      %c0_15 = arith.constant 0 : index
      %16 = vector.load %arg5[%c0_14, %c0_15] : memref<256x8xf32, #tpu.memory_space<vmem>>, vector<256x8xf32>
      tpu.vector_store %arg5[%c0_14, %c0_15], %15 {strides = array<i32>} : memref<256x8xf32, #tpu.memory_space<vmem>>, vector<256x8xf32>,
    } else {
    }
    return
  }
  func.func @transform_0(%arg0: i32, %arg1: i32) -> (i32, i32) {
    %c0_i32 = arith.constant 0 : i32
    return %arg0, %arg1 : i32, i32
  }
  func.func @transform_1(%arg0: i32, %arg1: i32) -> (i32, i32) {
    %c0_i32 = arith.constant 0 : i32
    %c0_i32_0 = arith.constant 0 : i32
    return %arg1, %c0_i32 : i32, i32
  }
  func.func @transform_2(%arg0: i32, %arg1: i32) -> (i32, i32) {
    %c0_i32 = arith.constant 0 : i32
    %c0_i32_0 = arith.constant 0 : i32
    %c0_i32_1 = arith.constant 0 : i32
    return %c0_i32, %c0_i32_0 : i32, i32
  }
  func.func @transform_3(%arg0: i32, %arg1: i32) -> (i32, i32) {
    %c0_i32 = arith.constant 0 : i32
    %c0_i32_0 = arith.constant 0 : i32
    return %arg0, %c0_i32 : i32, i32
  }
}

</mosaic_0001>

<llo_original>
// kernel: tpu_custom_call.1
$region0: #{tpu_custom_call.1}
  #allocation0 [shape = 'u32[]', space=smem, size = 0x4, offset = 0x4, fixed_abs, tag = 'smem constant byte address 0x4 - core index']
  #allocation1 [shape = 'u32[144,128]{1,0:T(1,128)}', space=vmem, size = 0x12000, scoped, tag = 'internal scratch']
  %s0 = inlined_call_operand.hbm [shape: f32[8,128], index: 0, kind: input, shape index: {}]
  %s1 = inlined_call_operand.hbm [shape: f32[8,128], index: 1, kind: output, shape index: {}]
  %s2 = sld [smem:[#allocation0]]
  $region18: #{tpu_custom_call.1} parent=0
    _
  %s4 = ssub.s32 1, %s2
  %s5 = scalar_select 0, %s4, %s2
  $region1: #{tpu_custom_call.1} parent=0
    #allocation2 [shape = 'u8[4096]{0}', space=vmem, size = 0x1000, scoped, tag = 'input window, operand 0, single buffered']
    #allocation3 [shape = 's32[1]{0}', space=sflag, size = 0x4, scoped, tag = 'scoped memory for tpu_custom_call.1']
    #allocation4 [shape = 's32[1]{0}', space=sflag, size = 0x4, scoped, tag = 'scoped memory for tpu_custom_call.1']
    #allocation5 [shape = 'u8[4096]{0}', space=vmem, size = 0x1000, scoped, tag = 'output window, operand 0, single buffered']
    %6 = vsyncpa [#allocation3], 0
    %7 = vsyncpa [#allocation4], 0
    // Predicated region
    $region2: #{tpu_custom_call.1} parent=1 // pred_check
      _
    $region3: #{tpu_custom_call.1} parent=1 // pred_check_branch
      %9 = sbr.rel (0) target = $region5
    $region4: #{tpu_custom_call.1} parent=1 // pred_region
      %s11 = ssub.s32 128, 128
      %12 = vsyncadd [#allocation3], %s11
      %s14 = sshll.u32 [#allocation2], 4
      %s15 = int_to_ptr.vmem [resolvable:$true] %s14
      %17 = dma.hbm_to_vmem [thread:$0]  %s0, 128, %s15, [#allocation3]
    $region5: #{tpu_custom_call.1} parent=1 // pred_fallthru
      _
    // Predicated region
    $region6: #{tpu_custom_call.1} parent=1 // pred_check
      _
    $region7: #{tpu_custom_call.1} parent=1 // pred_check_branch
      %19 = sbr.rel (0) target = $region9
    $region8: #{tpu_custom_call.1} parent=1 // pred_region
      %20 = dma.done [#allocation3], 128
    $region9: #{tpu_custom_call.1} parent=1 // pred_fallthru
      _
    %v21 = vld [vmem:[#allocation2] sm:$0xff]
    %v22 = vadd.f32 %v21, 1.0
    %23 = vst [vmem:[#allocation5] sm:$0xff] %v22
    // Predicated region
    $region10: #{tpu_custom_call.1} parent=1 // pred_check
      _
    $region11: #{tpu_custom_call.1} parent=1 // pred_check_branch
      %25 = sbr.rel (0) target = $region13
    $region12: #{tpu_custom_call.1} parent=1 // pred_region
      %s27 = ssub.s32 128, 128
      %28 = vsyncadd [#allocation4], %s27
      %s30 = sshll.u32 [#allocation5], 4
      %s31 = int_to_ptr.vmem [resolvable:$true] %s30
      %33 = dma.vmem_to_hbm [thread:$0]  %s31, 128, %s1, [#allocation4]
    $region13: #{tpu_custom_call.1} parent=1 // pred_fallthru
      _
    // Predicated region
    $region14: #{tpu_custom_call.1} parent=1 // pred_check
      _
    $region15: #{tpu_custom_call.1} parent=1 // pred_check_branch
      %35 = sbr.rel (0) target = $region17
    $region16: #{tpu_custom_call.1} parent=1 // pred_region
      %36 = dma.done [#allocation4], 128
    $region17: #{tpu_custom_call.1} parent=1 // pred_fallthru
      _
    %37 = vsyncpa [#allocation3], 1
    %38 = vsyncpa [#allocation4], 1

// kernel: _conv_var_unif_forward.1
$region0: #{_conv_var_unif_forward.1}
  #allocation0 [shape = 'u32[]', space=smem, size = 0x4, offset = 0x4, fixed_abs, tag = 'smem constant byte address 0x4 - core index']
  #allocation1 [shape = 'u32[144,128]{1,0:T(1,128)}', space=vmem, size = 0x12000, scoped, tag = 'internal scratch']
  #allocation2 [shape = 'f32[256,8]{1,0:T(8,128)}', space=vmem, size = 0x20000, scoped, tag = 'scratch operand']
  %s0 = inlined_call_operand.vmem [shape: bf16[512,36], index: 0, kind: input, shape index: {}]
  %s1 = inlined_call_operand.vmem [shape: bf16[36,8], index: 1, kind: input, shape index: {}]
  %s2 = inlined_call_operand.vmem [shape: f32[1,8], index: 2, kind: input, shape index: {}]
  %s3 = inlined_call_operand.vmem [shape: f32[512,8], index: 3, kind: output, shape index: {}]
  %s4 = sld [smem:[#allocation0]]
  $region53: #{_conv_var_unif_forward.1} parent=0
    _
  %s6 = ssub.s32 1, %s4
  %s7 = scalar_select 0, %s6, %s4
  loop: start=0, step=1, limit=4
  $region2: #{_conv_var_unif_forward.1} parent=0 // loop_pre_header
    _
  $region3: #{_conv_var_unif_forward.1} parent=0 // loop_header
    %s9 = sphi 0, %s13
    %p10 = scmp.ge.s32.totalorder %s9, 4
    %s16 = sphi 0, %s28
    %s17 = sphi 0, %s24
    %s18 = sphi 0, %s16
    %s19 = sphi 0, %s17
    %s20 = sphi 0, %s18
    %s21 = sphi 0, %s19
    %s33 = sphi 0, %s35
    %s36 = sphi 0, %s33
    %s37 = sphi 0, %s36
    %s53 = sphi 0, %s37
    %s59 = sphi 0, %s61
    %s62 = sphi 0, %s59
    %s63 = sphi 0, %s62
    %s79 = sphi 0, %s63
    %s83 = sphi 0, %s83
    %s85 = sphi 0, %s83
    %s86 = sphi 0, %s85
    %s100 = sphi 0, %s86
    %s106 = sphi 0, %s108
    %s109 = sphi 0, %s106
    %s110 = sphi 0, %s109
    %s126 = sphi 0, %s110
  $region4: #{_conv_var_unif_forward.1} parent=0 // loop_header_branch
    %12 = sbr.rel (%p10) target = $region8
  $region5: #{_conv_var_unif_forward.1} parent=0 // loop_body
    %s14 = ssub.s32 %s9, 1
    %s15 = ssub.s32 %s9, 2
    %s22 = sadd.s32 1, %s17
    %p23 = scmp.ge.s32.totalorder %s22, 1
    %s24 = scalar_select %p23, 0, %s22
    %s25 = sadd.s32 1, %s16
    %s26 = scalar_select %p23, %s25, %s16
    %p27 = scmp.ge.s32.totalorder %s26, 2
    %s28 = scalar_select %p27, 0, %s26
    %s29 = ssub.s32 %s16, %s28
    %s30 = ssub.s32 %s17, %s24
    %s31 = sor.u32 %s29, %s30
    %p32 = scmp.eq.s32.totalorder %s31, 0
    %s34 = sadd.s32 %s33, 1
    %s35 = scalar_select %p32, %s33, %s34
    %p38 = pneg %p32
    %p39 = scmp.eq.s32.totalorder %s9, 1
    %p40 = por %p38, %p39
    %p41 = scmp.ne.s32.totalorder %s33, %s36
    %p42 = scmp.eq.s32.totalorder %s9, 0
    %p43 = por %p41, %p42
    %p44 = scmp.ne.s32.totalorder %s33, %s36
    %p45 = scmp.eq.s32.totalorder %s14, 1
    %p46 = por %p44, %p45
    %p47 = scmp.ne.s32.totalorder %s36, %s37
    %p48 = scmp.eq.s32.totalorder %s14, 0
    %p49 = por %p47, %p48
    %p50 = scmp.ne.s32.totalorder %s36, %s37
    %p51 = scmp.eq.s32.totalorder %s15, 1
    %p52 = por %p50, %p51
    %p54 = scmp.ne.s32.totalorder %s37, %s53
    %p55 = scmp.eq.s32.totalorder %s15, 0
    %p56 = por %p54, %p55
    %s57 = ssub.s32 %s17, %s24
    %p58 = scmp.eq.s32.totalorder %s57, 0
    %s60 = sadd.s32 %s59, 1
    %s61 = scalar_select %p58, %s59, %s60
    %p64 = pneg %p58
    %p65 = scmp.eq.s32.totalorder %s9, 1
    %p66 = por %p64, %p65
    %p67 = scmp.ne.s32.totalorder %s59, %s62
    %p68 = scmp.eq.s32.totalorder %s9, 0
    %p69 = por %p67, %p68
    %p70 = scmp.ne.s32.totalorder %s59, %s62
    %p71 = scmp.eq.s32.totalorder %s14, 1
    %p72 = por %p70, %p71
    %p73 = scmp.ne.s32.totalorder %s62, %s63
    %p74 = scmp.eq.s32.totalorder %s14, 0
    %p75 = por %p73, %p74
    %p76 = scmp.ne.s32.totalorder %s62, %s63
    %p77 = scmp.eq.s32.totalorder %s15, 1
    %p78 = por %p76, %p77
    %p80 = scmp.ne.s32.totalorder %s63, %s79
    %p81 = scmp.eq.s32.totalorder %s15, 0
    %p82 = por %p80, %p81
    %s84 = sadd.s32 %s83, 1
    %p87 = scmp.eq.s32.totalorder %s9, 1
    %p88 = scmp.ne.s32.totalorder %s83, %s85
    %p89 = scmp.eq.s32.totalorder %s9, 0
    %p90 = por %p88, %p89
    %p91 = scmp.ne.s32.totalorder %s83, %s85
    %p92 = scmp.eq.s32.totalorder %s14, 1
    %p93 = por %p91, %p92
    %p94 = scmp.ne.s32.totalorder %s85, %s86
    %p95 = scmp.eq.s32.totalorder %s14, 0
    %p96 = por %p94, %p95
    %p97 = scmp.ne.s32.totalorder %s85, %s86
    %p98 = scmp.eq.s32.totalorder %s15, 1
    %p99 = por %p97, %p98
    %p101 = scmp.ne.s32.totalorder %s86, %s100
    %p102 = scmp.eq.s32.totalorder %s15, 0
    %p103 = por %p101, %p102
    %s104 = ssub.s32 %s16, %s28
    %p105 = scmp.eq.s32.totalorder %s104, 0
    %s107 = sadd.s32 %s106, 1
    %s108 = scalar_select %p105, %s106, %s107
    %p111 = pneg %p105
    %p112 = scmp.eq.s32.totalorder %s9, 1
    %p113 = por %p111, %p112
    %p114 = scmp.ne.s32.totalorder %s106, %s109
    %p115 = scmp.eq.s32.totalorder %s9, 0
    %p116 = por %p114, %p115
    %p117 = scmp.ne.s32.totalorder %s106, %s109
    %p118 = scmp.eq.s32.totalorder %s14, 1
    %p119 = por %p117, %p118
    %p120 = scmp.ne.s32.totalorder %s109, %s110
    %p121 = scmp.eq.s32.totalorder %s14, 0
    %p122 = por %p120, %p121
    %p123 = scmp.ne.s32.totalorder %s109, %s110
    %p124 = scmp.eq.s32.totalorder %s15, 1
    %p125 = por %p123, %p124
    %p127 = scmp.ne.s32.totalorder %s110, %s126
    %p128 = scmp.eq.s32.totalorder %s15, 0
    %p129 = por %p127, %p128
    %p130 = scmp.le.s32.totalorder 1, %s9
    %p131 = scmp.lt.s32.totalorder %s9, 3
    %p132 = pnand %p130, %p131
    %p133 = pneg %p132
    // Predicated region
    $region9: #{_conv_var_unif_forward.1} parent=5 // pred_check
      _
    $region10: #{_conv_var_unif_forward.1} parent=5 // pred_check_branch
      %135 = sbr.rel (%p132) target = $region12
    $region11: #{_conv_var_unif_forward.1} parent=5 // pred_region
      %s136 = ssub.s32 %s9, 1
      // Predicated region
      $region13: #{_conv_var_unif_forward.1} parent=11 // pred_check
        %p137 = pneg %p75
      $region14: #{_conv_var_unif_forward.1} parent=11 // pred_check_branch
        %139 = sbr.rel (%p137) target = $region16
      $region15: #{_conv_var_unif_forward.1} parent=11 // pred_region
        %s140 = smul.u32 5, %s19
        %p141 = scmp.lt.s32.totalorder %s140, 4
        %s142 = scalar_select %p141, %s140, 4
        %s143 = smul.addr %s142, 4
        %s144 = scalar_lea.vmem %s1, %s143
        %s145 = smul.u32 5, %s19
      $region16: #{_conv_var_unif_forward.1} parent=11 // pred_fallthru
        _
      // Predicated region
      $region17: #{_conv_var_unif_forward.1} parent=11 // pred_check
        %p146 = pneg %p96
      $region18: #{_conv_var_unif_forward.1} parent=11 // pred_check_branch
        %148 = sbr.rel (%p146) target = $region20
      $region19: #{_conv_var_unif_forward.1} parent=11 // pred_region
        _
      $region20: #{_conv_var_unif_forward.1} parent=11 // pred_fallthru
        _
    $region12: #{_conv_var_unif_forward.1} parent=5 // pred_fallthru
      _
    %p149 = scmp.lt.s32.totalorder %s9, 2
    // Predicated region
    $region21: #{_conv_var_unif_forward.1} parent=5 // pred_check
      %p150 = pneg %p149
    $region22: #{_conv_var_unif_forward.1} parent=5 // pred_check_branch
      %152 = sbr.rel (%p150) target = $region24
    $region23: #{_conv_var_unif_forward.1} parent=5 // pred_region
      // Predicated region
      $region25: #{_conv_var_unif_forward.1} parent=23 // pred_check
        %p153 = pneg %p43
      $region26: #{_conv_var_unif_forward.1} parent=23 // pred_check_branch
        %155 = sbr.rel (%p153) target = $region28
      $region27: #{_conv_var_unif_forward.1} parent=23 // pred_region
        %s156 = smul.u32 32, %s16
        %p157 = scmp.lt.s32.totalorder %s156, 63
        %s158 = scalar_select %p157, %s156, 63
        %p159 = scmp.lt.s32.totalorder %s17, 0
        %s160 = scalar_select %p159, %s17, 0
        %s161 = sadd.s32 %s160, %s158
        %s162 = smul.addr %s161, 4
        %s163 = scalar_lea.vmem %s0, %s162
        %s164 = smul.u32 32, %s16
      $region28: #{_conv_var_unif_forward.1} parent=23 // pred_fallthru
        _
    $region24: #{_conv_var_unif_forward.1} parent=5 // pred_fallthru
      _
    %p165 = scmp.le.s32.totalorder 1, %s9
    %p166 = scmp.lt.s32.totalorder %s9, 3
    %p167 = pnand %p165, %p166
    %p168 = pneg %p167
    // Predicated region
    $region29: #{_conv_var_unif_forward.1} parent=5 // pred_check
      _
    $region30: #{_conv_var_unif_forward.1} parent=5 // pred_check_branch
      %170 = sbr.rel (%p167) target = $region32
    $region31: #{_conv_var_unif_forward.1} parent=5 // pred_region
      %s171 = ssub.s32 %s9, 1
      %s172 = smul.u32 32, %s18
      %p173 = scmp.lt.s32.totalorder %s172, 63
      %s174 = scalar_select %p173, %s172, 63
      %p175 = scmp.lt.s32.totalorder %s19, 0
      %s176 = scalar_select %p175, %s19, 0
      %s177 = sadd.s32 %s176, %s174
      %s178 = smul.addr %s177, 4
      %s179 = scalar_lea.vmem %s0, %s178
      %p180 = pneg %p49
      %p181 = pneg %p46
      %s182 = smul.u32 5, %s19
      %p183 = scmp.lt.s32.totalorder %s182, 4
      %s184 = scalar_select %p183, %s182, 4
      %s185 = smul.addr %s184, 4
      %s186 = scalar_lea.vmem %s1, %s185
      %p187 = pneg %p75
      %p188 = pneg %p72
      %p189 = pneg %p96
      %p190 = pneg %p93
      %p191 = pneg %p122
      %p192 = pneg %p119
      %s193 = smul.u32 32, %s18
      %p194 = scmp.lt.s32.totalorder %s193, 63
      %s195 = scalar_select %p194, %s193, 63
      %s196 = smul.addr %s195, 8
      %s197 = scalar_lea.vmem %s3, %s196
      %s198 = smul.u32 32, %s18
      %p199 = scmp.lt.s32.totalorder %s198, 63
      %s200 = scalar_select %p199, %s198, 63
      %p201 = scmp.lt.s32.totalorder %s19, 0
      %s202 = scalar_select %p201, %s19, 0
      %s203 = sadd.s32 %s202, %s200
      %s204 = smul.addr %s203, 4
      %s205 = scalar_lea.vmem %s0, %s204
      %s206 = smul.u32 32, %s18
      %s207 = smul.u32 5, %s19
      %p208 = scmp.lt.s32.totalorder %s207, 4
      %s209 = scalar_select %p208, %s207, 4
      %s210 = smul.addr %s209, 4
      %s211 = scalar_lea.vmem %s1, %s210
      %s212 = smul.u32 5, %s19
      %s213 = smul.u32 32, %s18
      %p214 = scmp.lt.s32.totalorder %s213, 63
      %s215 = scalar_select %p214, %s213, 63
      %s216 = smul.addr %s215, 8
      %s217 = scalar_lea.vmem %s3, %s216
      %s218 = smul.u32 32, %s18
      %p220 = scmp.eq.s32.totalorder %s19, 0
      // Predicated region
      $region33: #{_conv_var_unif_forward.1} parent=31 // pred_check
        %p221 = pneg %p220
      $region34: #{_conv_var_unif_forward.1} parent=31 // pred_check_branch
        %223 = sbr.rel (%p221) target = $region36
      $region35: #{_conv_var_unif_forward.1} parent=31 // pred_region
        %vm224 = vcmask 64512
        %225 = vst.msk [vmem:[#allocation2] sm:$0xff] %vm224, 0.0
        %226 = vst.msk [vmem:[#allocation2 + $0x8] sm:$0xff] %vm224, 0.0
        %227 = vst.msk [vmem:[#allocation2 + $0x10] sm:$0xff] %vm224, 0.0
        %228 = vst.msk [vmem:[#allocation2 + $0x18] sm:$0xff] %vm224, 0.0
        %229 = vst.msk [vmem:[#allocation2 + $0x20] sm:$0xff] %vm224, 0.0
        %230 = vst.msk [vmem:[#allocation2 + $0x28] sm:$0xff] %vm224, 0.0
        %231 = vst.msk [vmem:[#allocation2 + $0x30] sm:$0xff] %vm224, 0.0
        %232 = vst.msk [vmem:[#allocation2 + $0x38] sm:$0xff] %vm224, 0.0
        %233 = vst.msk [vmem:[#allocation2 + $0x40] sm:$0xff] %vm224, 0.0
        %234 = vst.msk [vmem:[#allocation2 + $0x48] sm:$0xff] %vm224, 0.0
        %235 = vst.msk [vmem:[#allocation2 + $0x50] sm:$0xff] %vm224, 0.0
        %236 = vst.msk [vmem:[#allocation2 + $0x58] sm:$0xff] %vm224, 0.0
        %237 = vst.msk [vmem:[#allocation2 + $0x60] sm:$0xff] %vm224, 0.0
        %238 = vst.msk [vmem:[#allocation2 + $0x68] sm:$0xff] %vm224, 0.0
        %239 = vst.msk [vmem:[#allocation2 + $0x70] sm:$0xff] %vm224, 0.0
        %240 = vst.msk [vmem:[#allocation2 + $0x78] sm:$0xff] %vm224, 0.0
        %241 = vst.msk [vmem:[#allocation2 + $0x80] sm:$0xff] %vm224, 0.0
        %242 = vst.msk [vmem:[#allocation2 + $0x88] sm:$0xff] %vm224, 0.0
        %243 = vst.msk [vmem:[#allocation2 + $0x90] sm:$0xff] %vm224, 0.0
        %244 = vst.msk [vmem:[#allocation2 + $0x98] sm:$0xff] %vm224, 0.0
        %245 = vst.msk [vmem:[#allocation2 + $0xa0] sm:$0xff] %vm224, 0.0
        %246 = vst.msk [vmem:[#allocation2 + $0xa8] sm:$0xff] %vm224, 0.0
        %247 = vst.msk [vmem:[#allocation2 + $0xb0] sm:$0xff] %vm224, 0.0
        %248 = vst.msk [vmem:[#allocation2 + $0xb8] sm:$0xff] %vm224, 0.0
        %249 = vst.msk [vmem:[#allocation2 + $0xc0] sm:$0xff] %vm224, 0.0
        %250 = vst.msk [vmem:[#allocation2 + $0xc8] sm:$0xff] %vm224, 0.0
        %251 = vst.msk [vmem:[#allocation2 + $0xd0] sm:$0xff] %vm224, 0.0
        %252 = vst.msk [vmem:[#allocation2 + $0xd8] sm:$0xff] %vm224, 0.0
        %253 = vst.msk [vmem:[#allocation2 + $0xe0] sm:$0xff] %vm224, 0.0
        %254 = vst.msk [vmem:[#allocation2 + $0xe8] sm:$0xff] %vm224, 0.0
        %255 = vst.msk [vmem:[#allocation2 + $0xf0] sm:$0xff] %vm224, 0.0
        %256 = vst.msk [vmem:[#allocation2 + $0xf8] sm:$0xff] %vm224, 0.0
      $region36: #{_conv_var_unif_forward.1} parent=31 // pred_fallthru
        _
      %v257 = vld [vmem:[#allocation2] sm:$0xff]
      %v258 = vld [vmem:[#allocation2 + $0x8] sm:$0xff]
      %v259 = vld [vmem:[#allocation2 + $0x10] sm:$0xff]
      %v260 = vld [vmem:[#allocation2 + $0x18] sm:$0xff]
      %v261 = vld [vmem:[#allocation2 + $0x20] sm:$0xff]
      %v262 = vld [vmem:[#allocation2 + $0x28] sm:$0xff]
      %v263 = vld [vmem:[#allocation2 + $0x30] sm:$0xff]
      %v264 = vld [vmem:[#allocation2 + $0x38] sm:$0xff]
      %v265 = vld [vmem:[#allocation2 + $0x40] sm:$0xff]
      %v266 = vld [vmem:[#allocation2 + $0x48] sm:$0xff]
      %v267 = vld [vmem:[#allocation2 + $0x50] sm:$0xff]
      %v268 = vld [vmem:[#allocation2 + $0x58] sm:$0xff]
      %v269 = vld [vmem:[#allocation2 + $0x60] sm:$0xff]
      %v270 = vld [vmem:[#allocation2 + $0x68] sm:$0xff]
      %v271 = vld [vmem:[#allocation2 + $0x70] sm:$0xff]
      %v272 = vld [vmem:[#allocation2 + $0x78] sm:$0xff]
      %v273 = vld [vmem:[#allocation2 + $0x80] sm:$0xff]
      %v274 = vld [vmem:[#allocation2 + $0x88] sm:$0xff]
      %v275 = vld [vmem:[#allocation2 + $0x90] sm:$0xff]
      %v276 = vld [vmem:[#allocation2 + $0x98] sm:$0xff]
      %v277 = vld [vmem:[#allocation2 + $0xa0] sm:$0xff]
      %v278 = vld [vmem:[#allocation2 + $0xa8] sm:$0xff]
      %v279 = vld [vmem:[#allocation2 + $0xb0] sm:$0xff]
      %v280 = vld [vmem:[#allocation2 + $0xb8] sm:$0xff]
      %v281 = vld [vmem:[#allocation2 + $0xc0] sm:$0xff]
      %v282 = vld [vmem:[#allocation2 + $0xc8] sm:$0xff]
      %v283 = vld [vmem:[#allocation2 + $0xd0] sm:$0xff]
      %v284 = vld [vmem:[#allocation2 + $0xd8] sm:$0xff]
      %v285 = vld [vmem:[#allocation2 + $0xe0] sm:$0xff]
      %v286 = vld [vmem:[#allocation2 + $0xe8] sm:$0xff]
      %v287 = vld [vmem:[#allocation2 + $0xf0] sm:$0xff]
      %v288 = vld [vmem:[#allocation2 + $0xf8] sm:$0xff]
      %v289 = vld [vmem:[%s205] sm:$0xf]
      %v290 = vld [vmem:[%s205 + $0x4] sm:$0xf]
      %v291 = vld [vmem:[%s205 + $0x8] sm:$0xf]
      %v292 = vld [vmem:[%s205 + $0xc] sm:$0xf]
      %v293 = vld [vmem:[%s205 + $0x10] sm:$0xf]
      %v294 = vld [vmem:[%s205 + $0x14] sm:$0xf]
      %v295 = vld [vmem:[%s205 + $0x18] sm:$0xf]
      %v296 = vld [vmem:[%s205 + $0x1c] sm:$0xf]
      %v297 = vld [vmem:[%s205 + $0x20] sm:$0xf]
      %v298 = vld [vmem:[%s205 + $0x24] sm:$0xf]
      %v299 = vld [vmem:[%s205 + $0x28] sm:$0xf]
      %v300 = vld [vmem:[%s205 + $0x2c] sm:$0xf]
      %v301 = vld [vmem:[%s205 + $0x30] sm:$0xf]
      %v302 = vld [vmem:[%s205 + $0x34] sm:$0xf]
      %v303 = vld [vmem:[%s205 + $0x38] sm:$0xf]
      %v304 = vld [vmem:[%s205 + $0x3c] sm:$0xf]
      %v305 = vld [vmem:[%s205 + $0x40] sm:$0xf]
      %v306 = vld [vmem:[%s205 + $0x44] sm:$0xf]
      %v307 = vld [vmem:[%s205 + $0x48] sm:$0xf]
      %v308 = vld [vmem:[%s205 + $0x4c] sm:$0xf]
      %v309 = vld [vmem:[%s205 + $0x50] sm:$0xf]
      %v310 = vld [vmem:[%s205 + $0x54] sm:$0xf]
      %v311 = vld [vmem:[%s205 + $0x58] sm:$0xf]
      %v312 = vld [vmem:[%s205 + $0x5c] sm:$0xf]
      %v313 = vld [vmem:[%s205 + $0x60] sm:$0xf]
      %v314 = vld [vmem:[%s205 + $0x64] sm:$0xf]
      %v315 = vld [vmem:[%s205 + $0x68] sm:$0xf]
      %v316 = vld [vmem:[%s205 + $0x6c] sm:$0xf]
      %v317 = vld [vmem:[%s205 + $0x70] sm:$0xf]
      %v318 = vld [vmem:[%s205 + $0x74] sm:$0xf]
      %v319 = vld [vmem:[%s205 + $0x78] sm:$0xf]
      %v320 = vld [vmem:[%s205 + $0x7c] sm:$0xf]
      %v321 = vld [vmem:[%s211] sm:$0xf]
      %v322 = vld [vmem:[%s211 + $0x4] sm:$0xf]
      %v323 = vld [vmem:[%s211 + $0x8] sm:$0xf]
      %v324 = vld [vmem:[%s211 + $0xc] sm:$0xf]
      %v325 = vld [vmem:[%s211 + $0x10] sm:$0x3]
      %v358 = vunpack.c.l.b16 %v289
      %v359 = vunpack.c.l.b16 %v290
      %v360 = vunpack.c.l.b16 %v291
      %v361 = vunpack.c.l.b16 %v292
      %v362 = vunpack.c.l.b16 %v293
      %v363 = vunpack.c.l.b16 %v294
      %v364 = vunpack.c.l.b16 %v295
      %v365 = vunpack.c.l.b16 %v296
      %v366 = vunpack.c.l.b16 %v297
      %v367 = vunpack.c.l.b16 %v298
      %v368 = vunpack.c.l.b16 %v299
      %v369 = vunpack.c.l.b16 %v300
      %v370 = vunpack.c.l.b16 %v301
      %v371 = vunpack.c.l.b16 %v302
      %v372 = vunpack.c.l.b16 %v303
      %v373 = vunpack.c.l.b16 %v304
      %v374 = vunpack.c.l.b16 %v305
      %v375 = vunpack.c.l.b16 %v306
      %v376 = vunpack.c.l.b16 %v307
      %v377 = vunpack.c.l.b16 %v308
      %v378 = vunpack.c.l.b16 %v309
      %v379 = vunpack.c.l.b16 %v310
      %v380 = vunpack.c.l.b16 %v311
      %v381 = vunpack.c.l.b16 %v312
      %v382 = vunpack.c.l.b16 %v313
      %v383 = vunpack.c.l.b16 %v314
      %v384 = vunpack.c.l.b16 %v315
      %v385 = vunpack.c.l.b16 %v316
      %v386 = vunpack.c.l.b16 %v317
      %v387 = vunpack.c.l.b16 %v318
      %v388 = vunpack.c.l.b16 %v319
      %v389 = vunpack.c.l.b16 %v320
      %v390 = vpack.c.b16 %v359, %v358
      %v391 = vpack.c.b16 %v361, %v360
      %v392 = vpack.c.b16 %v363, %v362
      %v393 = vpack.c.b16 %v365, %v364
      %v394 = vpack.c.b16 %v367, %v366
      %v395 = vpack.c.b16 %v369, %v368
      %v396 = vpack.c.b16 %v371, %v370
      %v397 = vpack.c.b16 %v373, %v372
      %v398 = vpack.c.b16 %v375, %v374
      %v399 = vpack.c.b16 %v377, %v376
      %v400 = vpack.c.b16 %v379, %v378
      %v401 = vpack.c.b16 %v381, %v380
      %v402 = vpack.c.b16 %v383, %v382
      %v403 = vpack.c.b16 %v385, %v384
      %v404 = vpack.c.b16 %v387, %v386
      %v405 = vpack.c.b16 %v389, %v388
      %v411 = vunpack.c.l.b16 %v321
      %v412 = vunpack.c.l.b16 %v322
      %v413 = vunpack.c.l.b16 %v323
      %v414 = vunpack.c.l.b16 %v324
      %v415 = vunpack.c.l.b16 %v325
      %v416 = vpack.c.b16 %v412, %v411
      %v417 = vpack.c.b16 %v414, %v413
      %v418 = vpack.c.b16 %v415, %v415
      %vm421 = vcmask 293888
      %v423 = vsel %vm421, %v390, 0
      %v426 = vsel %vm421, %v391, 0
      %v429 = vsel %vm421, %v392, 0
      %v432 = vsel %vm421, %v393, 0
      %v435 = vsel %vm421, %v394, 0
      %v438 = vsel %vm421, %v395, 0
      %v441 = vsel %vm421, %v396, 0
      %v444 = vsel %vm421, %v397, 0
      %v447 = vsel %vm421, %v398, 0
      %v450 = vsel %vm421, %v399, 0
      %v453 = vsel %vm421, %v400, 0
      %v456 = vsel %vm421, %v401, 0
      %v459 = vsel %vm421, %v402, 0
      %v462 = vsel %vm421, %v403, 0
      %v465 = vsel %vm421, %v404, 0
      %v468 = vsel %vm421, %v405, 0
      %vm470 = vcmask 1041408
      %v472 = vsel %vm470, %v418, 0
      %474 = vmatprep.subr.bf16.mxu0 0
      %475 = vmatpush1.bf16.msra.mxu0 %v416
      %476 = vmatprep.subr.bf16.mxu0 0
      %477 = vmatpush1.bf16.msra.mxu0 %v417
      %478 = vmatprep.subr.bf16.mxu0 0
      %479 = vmatpush1.bf16.msra.mxu0 %v472
      %480 = vmatprep.subr.bf16.mxu0 0
      %481 = vmatpush1.bf16.msra.mxu0 0
      %482 = vmatprep.subr.bf16.mxu0 0
      %483 = vmatpush1.bf16.msra.mxu0 0
      %484 = vmatprep.subr.bf16.mxu0 0
      %485 = vmatpush1.bf16.msra.mxu0 0
      %486 = vmatprep.subr.bf16.mxu0 0
      %487 = vmatpush1.bf16.msra.mxu0 0
      %488 = vmatprep.subr.bf16.mxu0 0
      %489 = vmatpush1.bf16.msra.mxu0 0
      %490 = vmatprep.subr.bf16.mxu0 0
      %491 = vmatpush1.bf16.msra.mxu0 0
      %492 = vmatprep.subr.bf16.mxu0 0
      %493 = vmatpush1.bf16.msra.mxu0 0
      %494 = vmatprep.subr.bf16.mxu0 0
      %495 = vmatpush1.bf16.msra.mxu0 0
      %496 = vmatprep.subr.bf16.mxu0 0
      %497 = vmatpush1.bf16.msra.mxu0 0
      %498 = vmatprep.subr.bf16.mxu0 0
      %499 = vmatpush1.bf16.msra.mxu0 0
      %500 = vmatprep.subr.bf16.mxu0 0
      %501 = vmatpush1.bf16.msra.mxu0 0
      %502 = vmatprep.subr.bf16.mxu0 0
      %503 = vmatpush1.bf16.msra.mxu0 0
      %504 = vmatprep.subr.bf16.mxu0 0
      %505 = vmatpush1.bf16.msra.mxu0 0
      %506 = vmatprep.mubr.bf16.mxu0 0
      %507 = vmatmul.mubr.bf16.gmra.mrb[0].mxu0 %v423
      %v508 = vpop.f32.mrb[0].mxu0
      %v509 = vadd.f32 0.0, %v508
      %v510 = vpop.f32.mrb[0].mxu0
      %v511 = vpop.f32.mrb[0].mxu0
      %v512 = vadd.f32 0.0, %v511
      %v513 = vpop.f32.mrb[0].mxu0
      %514 = vmatprep.mubr.bf16.mxu0 0
      %515 = vmatmul.mubr.bf16.gmra.mrb[0].mxu0 %v426
      %v516 = vpop.f32.mrb[0].mxu0
      %v517 = vadd.f32 0.0, %v516
      %v518 = vpop.f32.mrb[0].mxu0
      %v519 = vpop.f32.mrb[0].mxu0
      %v520 = vadd.f32 0.0, %v519
      %v521 = vpop.f32.mrb[0].mxu0
      %522 = vmatprep.mubr.bf16.mxu0 0
      %523 = vmatmul.mubr.bf16.gmra.mrb[0].mxu0 %v429
      %v524 = vpop.f32.mrb[0].mxu0
      %v525 = vadd.f32 0.0, %v524
      %v526 = vpop.f32.mrb[0].mxu0
      %v527 = vpop.f32.mrb[0].mxu0
      %v528 = vadd.f32 0.0, %v527
      %v529 = vpop.f32.mrb[0].mxu0
      %530 = vmatprep.mubr.bf16.mxu0 0
      %531 = vmatmul.mubr.bf16.gmra.mrb[0].mxu0 %v432
      %v532 = vpop.f32.mrb[0].mxu0
      %v533 = vadd.f32 0.0, %v532
      %v534 = vpop.f32.mrb[0].mxu0
      %v535 = vpop.f32.mrb[0].mxu0
      %v536 = vadd.f32 0.0, %v535
      %v537 = vpop.f32.mrb[0].mxu0
      %538 = vmatprep.mubr.bf16.mxu0 0
      %539 = vmatmul.mubr.bf16.gmra.mrb[0].mxu0 %v435
      %v540 = vpop.f32.mrb[0].mxu0
      %v541 = vadd.f32 0.0, %v540
      %v542 = vpop.f32.mrb[0].mxu0
      %v543 = vpop.f32.mrb[0].mxu0
      %v544 = vadd.f32 0.0, %v543
      %v545 = vpop.f32.mrb[0].mxu0
      %546 = vmatprep.mubr.bf16.mxu0 0
      %547 = vmatmul.mubr.bf16.gmra.mrb[0].mxu0 %v438
      %v548 = vpop.f32.mrb[0].mxu0
      %v549 = vadd.f32 0.0, %v548
      %v550 = vpop.f32.mrb[0].mxu0
      %v551 = vpop.f32.mrb[0].mxu0
      %v552 = vadd.f32 0.0, %v551
      %v553 = vpop.f32.mrb[0].mxu0
      %554 = vmatprep.mubr.bf16.mxu0 0
      %555 = vmatmul.mubr.bf16.gmra.mrb[0].mxu0 %v441
      %v556 = vpop.f32.mrb[0].mxu0
      %v557 = vadd.f32 0.0, %v556
      %v558 = vpop.f32.mrb[0].mxu0
      %v559 = vpop.f32.mrb[0].mxu0
      %v560 = vadd.f32 0.0, %v559
      %v561 = vpop.f32.mrb[0].mxu0
      %562 = vmatprep.mubr.bf16.mxu0 0
      %563 = vmatmul.mubr.bf16.gmra.mrb[0].mxu0 %v444
      %v564 = vpop.f32.mrb[0].mxu0
      %v565 = vadd.f32 0.0, %v564
      %v566 = vpop.f32.mrb[0].mxu0
      %v567 = vpop.f32.mrb[0].mxu0
      %v568 = vadd.f32 0.0, %v567
      %v569 = vpop.f32.mrb[0].mxu0
      %570 = vmatprep.mubr.bf16.mxu0 0
      %571 = vmatmul.mubr.bf16.gmra.mrb[0].mxu0 %v447
      %v572 = vpop.f32.mrb[0].mxu0
      %v573 = vadd.f32 0.0, %v572
      %v574 = vpop.f32.mrb[0].mxu0
      %v575 = vpop.f32.mrb[0].mxu0
      %v576 = vadd.f32 0.0, %v575
      %v577 = vpop.f32.mrb[0].mxu0
      %578 = vmatprep.mubr.bf16.mxu0 0
      %579 = vmatmul.mubr.bf16.gmra.mrb[0].mxu0 %v450
      %v580 = vpop.f32.mrb[0].mxu0
      %v581 = vadd.f32 0.0, %v580
      %v582 = vpop.f32.mrb[0].mxu0
      %v583 = vpop.f32.mrb[0].mxu0
      %v584 = vadd.f32 0.0, %v583
      %v585 = vpop.f32.mrb[0].mxu0
      %586 = vmatprep.mubr.bf16.mxu0 0
      %587 = vmatmul.mubr.bf16.gmra.mrb[0].mxu0 %v453
      %v588 = vpop.f32.mrb[0].mxu0
      %v589 = vadd.f32 0.0, %v588
      %v590 = vpop.f32.mrb[0].mxu0
      %v591 = vpop.f32.mrb[0].mxu0
      %v592 = vadd.f32 0.0, %v591
      %v593 = vpop.f32.mrb[0].mxu0
      %594 = vmatprep.mubr.bf16.mxu0 0
      %595 = vmatmul.mubr.bf16.gmra.mrb[0].mxu0 %v456
      %v596 = vpop.f32.mrb[0].mxu0
      %v597 = vadd.f32 0.0, %v596
      %v598 = vpop.f32.mrb[0].mxu0
      %v599 = vpop.f32.mrb[0].mxu0
      %v600 = vadd.f32 0.0, %v599
      %v601 = vpop.f32.mrb[0].mxu0
      %602 = vmatprep.mubr.bf16.mxu0 0
      %603 = vmatmul.mubr.bf16.gmra.mrb[0].mxu0 %v459
      %v604 = vpop.f32.mrb[0].mxu0
      %v605 = vadd.f32 0.0, %v604
      %v606 = vpop.f32.mrb[0].mxu0
      %v607 = vpop.f32.mrb[0].mxu0
      %v608 = vadd.f32 0.0, %v607
      %v609 = vpop.f32.mrb[0].mxu0
      %610 = vmatprep.mubr.bf16.mxu0 0
      %611 = vmatmul.mubr.bf16.gmra.mrb[0].mxu0 %v462
      %v612 = vpop.f32.mrb[0].mxu0
      %v613 = vadd.f32 0.0, %v612
      %v614 = vpop.f32.mrb[0].mxu0
      %v615 = vpop.f32.mrb[0].mxu0
      %v616 = vadd.f32 0.0, %v615
      %v617 = vpop.f32.mrb[0].mxu0
      %618 = vmatprep.mubr.bf16.mxu0 0
      %619 = vmatmul.mubr.bf16.gmra.mrb[0].mxu0 %v465
      %v620 = vpop.f32.mrb[0].mxu0
      %v621 = vadd.f32 0.0, %v620
      %v622 = vpop.f32.mrb[0].mxu0
      %v623 = vpop.f32.mrb[0].mxu0
      %v624 = vadd.f32 0.0, %v623
      %v625 = vpop.f32.mrb[0].mxu0
      %626 = vmatprep.mubr.bf16.mxu0 0
      %627 = vmatmul.mubr.bf16.gmra.mrb[0].mxu0 %v468
      %v628 = vpop.f32.mrb[0].mxu0
      %v629 = vadd.f32 0.0, %v628
      %v630 = vpop.f32.mrb[0].mxu0
      %v631 = vpop.f32.mrb[0].mxu0
      %v632 = vadd.f32 0.0, %v631
      %v633 = vpop.f32.mrb[0].mxu0
      %634 = vdwg.mxu0
      %v635 = vadd.f32 %v257, %v509
      %v636 = vadd.f32 %v258, %v512
      %v637 = vadd.f32 %v259, %v517
      %v638 = vadd.f32 %v260, %v520
      %v639 = vadd.f32 %v261, %v525
      %v640 = vadd.f32 %v262, %v528
      %v641 = vadd.f32 %v263, %v533
      %v642 = vadd.f32 %v264, %v536
      %v643 = vadd.f32 %v265, %v541
      %v644 = vadd.f32 %v266, %v544
      %v645 = vadd.f32 %v267, %v549
      %v646 = vadd.f32 %v268, %v552
      %v647 = vadd.f32 %v269, %v557
      %v648 = vadd.f32 %v270, %v560
      %v649 = vadd.f32 %v271, %v565
      %v650 = vadd.f32 %v272, %v568
      %v651 = vadd.f32 %v273, %v573
      %v652 = vadd.f32 %v274, %v576
      %v653 = vadd.f32 %v275, %v581
      %v654 = vadd.f32 %v276, %v584
      %v655 = vadd.f32 %v277, %v589
      %v656 = vadd.f32 %v278, %v592
      %v657 = vadd.f32 %v279, %v597
      %v658 = vadd.f32 %v280, %v600
      %v659 = vadd.f32 %v281, %v605
      %v660 = vadd.f32 %v282, %v608
      %v661 = vadd.f32 %v283, %v613
      %v662 = vadd.f32 %v284, %v616
      %v663 = vadd.f32 %v285, %v621
      %v664 = vadd.f32 %v286, %v624
      %v665 = vadd.f32 %v287, %v629
      %v666 = vadd.f32 %v288, %v632
      %vm667 = vcmask 64512
      %668 = vst.msk [vmem:[#allocation2] sm:$0xff] %vm667, %v635
      %669 = vst.msk [vmem:[#allocation2 + $0x8] sm:$0xff] %vm667, %v636
      %670 = vst.msk [vmem:[#allocation2 + $0x10] sm:$0xff] %vm667, %v637
      %671 = vst.msk [vmem:[#allocation2 + $0x18] sm:$0xff] %vm667, %v638
      %672 = vst.msk [vmem:[#allocation2 + $0x20] sm:$0xff] %vm667, %v639
      %673 = vst.msk [vmem:[#allocation2 + $0x28] sm:$0xff] %vm667, %v640
      %674 = vst.msk [vmem:[#allocation2 + $0x30] sm:$0xff] %vm667, %v641
      %675 = vst.msk [vmem:[#allocation2 + $0x38] sm:$0xff] %vm667, %v642
      %676 = vst.msk [vmem:[#allocation2 + $0x40] sm:$0xff] %vm667, %v643
      %677 = vst.msk [vmem:[#allocation2 + $0x48] sm:$0xff] %vm667, %v644
      %678 = vst.msk [vmem:[#allocation2 + $0x50] sm:$0xff] %vm667, %v645
      %679 = vst.msk [vmem:[#allocation2 + $0x58] sm:$0xff] %vm667, %v646
      %680 = vst.msk [vmem:[#allocation2 + $0x60] sm:$0xff] %vm667, %v647
      %681 = vst.msk [vmem:[#allocation2 + $0x68] sm:$0xff] %vm667, %v648
      %682 = vst.msk [vmem:[#allocation2 + $0x70] sm:$0xff] %vm667, %v649
      %683 = vst.msk [vmem:[#allocation2 + $0x78] sm:$0xff] %vm667, %v650
      %684 = vst.msk [vmem:[#allocation2 + $0x80] sm:$0xff] %vm667, %v651
      %685 = vst.msk [vmem:[#allocation2 + $0x88] sm:$0xff] %vm667, %v652
      %686 = vst.msk [vmem:[#allocation2 + $0x90] sm:$0xff] %vm667, %v653
      %687 = vst.msk [vmem:[#allocation2 + $0x98] sm:$0xff] %vm667, %v654
      %688 = vst.msk [vmem:[#allocation2 + $0xa0] sm:$0xff] %vm667, %v655
      %689 = vst.msk [vmem:[#allocation2 + $0xa8] sm:$0xff] %vm667, %v656
      %690 = vst.msk [vmem:[#allocation2 + $0xb0] sm:$0xff] %vm667, %v657
      %691 = vst.msk [vmem:[#allocation2 + $0xb8] sm:$0xff] %vm667, %v658
      %692 = vst.msk [vmem:[#allocation2 + $0xc0] sm:$0xff] %vm667, %v659
      %693 = vst.msk [vmem:[#allocation2 + $0xc8] sm:$0xff] %vm667, %v660
      %694 = vst.msk [vmem:[#allocation2 + $0xd0] sm:$0xff] %vm667, %v661
      %695 = vst.msk [vmem:[#allocation2 + $0xd8] sm:$0xff] %vm667, %v662
      %696 = vst.msk [vmem:[#allocation2 + $0xe0] sm:$0xff] %vm667, %v663
      %697 = vst.msk [vmem:[#allocation2 + $0xe8] sm:$0xff] %vm667, %v664
      %698 = vst.msk [vmem:[#allocation2 + $0xf0] sm:$0xff] %vm667, %v665
      %699 = vst.msk [vmem:[#allocation2 + $0xf8] sm:$0xff] %vm667, %v666
      // Predicated region
      $region37: #{_conv_var_unif_forward.1} parent=31 // pred_check
        %p700 = pneg %p220
      $region38: #{_conv_var_unif_forward.1} parent=31 // pred_check_branch
        %702 = sbr.rel (%p700) target = $region40
      $region39: #{_conv_var_unif_forward.1} parent=31 // pred_region
        %v703 = vld [vmem:[#allocation2] sm:$0xff]
        %v704 = vld [vmem:[#allocation2 + $0x8] sm:$0xff]
        %v705 = vld [vmem:[#allocation2 + $0x10] sm:$0xff]
        %v706 = vld [vmem:[#allocation2 + $0x18] sm:$0xff]
        %v707 = vld [vmem:[#allocation2 + $0x20] sm:$0xff]
        %v708 = vld [vmem:[#allocation2 + $0x28] sm:$0xff]
        %v709 = vld [vmem:[#allocation2 + $0x30] sm:$0xff]
        %v710 = vld [vmem:[#allocation2 + $0x38] sm:$0xff]
        %v711 = vld [vmem:[#allocation2 + $0x40] sm:$0xff]
        %v712 = vld [vmem:[#allocation2 + $0x48] sm:$0xff]
        %v713 = vld [vmem:[#allocation2 + $0x50] sm:$0xff]
        %v714 = vld [vmem:[#allocation2 + $0x58] sm:$0xff]
        %v715 = vld [vmem:[#allocation2 + $0x60] sm:$0xff]
        %v716 = vld [vmem:[#allocation2 + $0x68] sm:$0xff]
        %v717 = vld [vmem:[#allocation2 + $0x70] sm:$0xff]
        %v718 = vld [vmem:[#allocation2 + $0x78] sm:$0xff]
        %v719 = vld [vmem:[#allocation2 + $0x80] sm:$0xff]
        %v720 = vld [vmem:[#allocation2 + $0x88] sm:$0xff]
        %v721 = vld [vmem:[#allocation2 + $0x90] sm:$0xff]
        %v722 = vld [vmem:[#allocation2 + $0x98] sm:$0xff]
        %v723 = vld [vmem:[#allocation2 + $0xa0] sm:$0xff]
        %v724 = vld [vmem:[#allocation2 + $0xa8] sm:$0xff]
        %v725 = vld [vmem:[#allocation2 + $0xb0] sm:$0xff]
        %v726 = vld [vmem:[#allocation2 + $0xb8] sm:$0xff]
        %v727 = vld [vmem:[#allocation2 + $0xc0] sm:$0xff]
        %v728 = vld [vmem:[#allocation2 + $0xc8] sm:$0xff]
        %v729 = vld [vmem:[#allocation2 + $0xd0] sm:$0xff]
        %v730 = vld [vmem:[#allocation2 + $0xd8] sm:$0xff]
        %v731 = vld [vmem:[#allocation2 + $0xe0] sm:$0xff]
        %v732 = vld [vmem:[#allocation2 + $0xe8] sm:$0xff]
        %v733 = vld [vmem:[#allocation2 + $0xf0] sm:$0xff]
        %v734 = vld [vmem:[#allocation2 + $0xf8] sm:$0xff]
        %v735 = vld [vmem:[%s2] sm:$0x1]
        %v737 = vlaneseq
        %v738 = vshrl.u32 %v737, 7
        %v739 = vsub.s32 0, %v738
        %v740 = vrot.slane %v735, %v739
        %v742 = vadd.f32 %v703, %v740
        %v743 = vadd.f32 %v704, %v740
        %v744 = vadd.f32 %v705, %v740
        %v745 = vadd.f32 %v706, %v740
        %v746 = vadd.f32 %v707, %v740
        %v747 = vadd.f32 %v708, %v740
        %v748 = vadd.f32 %v709, %v740
        %v749 = vadd.f32 %v710, %v740
        %v750 = vadd.f32 %v711, %v740
        %v751 = vadd.f32 %v712, %v740
        %v752 = vadd.f32 %v713, %v740
        %v753 = vadd.f32 %v714, %v740
        %v754 = vadd.f32 %v715, %v740
        %v755 = vadd.f32 %v716, %v740
        %v756 = vadd.f32 %v717, %v740
        %v757 = vadd.f32 %v718, %v740
        %v758 = vadd.f32 %v719, %v740
        %v759 = vadd.f32 %v720, %v740
        %v760 = vadd.f32 %v721, %v740
        %v761 = vadd.f32 %v722, %v740
        %v762 = vadd.f32 %v723, %v740
        %v763 = vadd.f32 %v724, %v740
        %v764 = vadd.f32 %v725, %v740
        %v765 = vadd.f32 %v726, %v740
        %v766 = vadd.f32 %v727, %v740
        %v767 = vadd.f32 %v728, %v740
        %v768 = vadd.f32 %v729, %v740
        %v769 = vadd.f32 %v730, %v740
        %v770 = vadd.f32 %v731, %v740
        %v771 = vadd.f32 %v732, %v740
        %v772 = vadd.f32 %v733, %v740
        %v773 = vadd.f32 %v734, %v740
        %774 = vst.msk [vmem:[%s217] sm:$0xff] %vm667, %v742
        %775 = vst.msk [vmem:[%s217 + $0x8] sm:$0xff] %vm667, %v743
        %776 = vst.msk [vmem:[%s217 + $0x10] sm:$0xff] %vm667, %v744
        %777 = vst.msk [vmem:[%s217 + $0x18] sm:$0xff] %vm667, %v745
        %778 = vst.msk [vmem:[%s217 + $0x20] sm:$0xff] %vm667, %v746
        %779 = vst.msk [vmem:[%s217 + $0x28] sm:$0xff] %vm667, %v747
        %780 = vst.msk [vmem:[%s217 + $0x30] sm:$0xff] %vm667, %v748
        %781 = vst.msk [vmem:[%s217 + $0x38] sm:$0xff] %vm667, %v749
        %782 = vst.msk [vmem:[%s217 + $0x40] sm:$0xff] %vm667, %v750
        %783 = vst.msk [vmem:[%s217 + $0x48] sm:$0xff] %vm667, %v751
        %784 = vst.msk [vmem:[%s217 + $0x50] sm:$0xff] %vm667, %v752
        %785 = vst.msk [vmem:[%s217 + $0x58] sm:$0xff] %vm667, %v753
        %786 = vst.msk [vmem:[%s217 + $0x60] sm:$0xff] %vm667, %v754
        %787 = vst.msk [vmem:[%s217 + $0x68] sm:$0xff] %vm667, %v755
        %788 = vst.msk [vmem:[%s217 + $0x70] sm:$0xff] %vm667, %v756
        %789 = vst.msk [vmem:[%s217 + $0x78] sm:$0xff] %vm667, %v757
        %790 = vst.msk [vmem:[%s217 + $0x80] sm:$0xff] %vm667, %v758
        %791 = vst.msk [vmem:[%s217 + $0x88] sm:$0xff] %vm667, %v759
        %792 = vst.msk [vmem:[%s217 + $0x90] sm:$0xff] %vm667, %v760
        %793 = vst.msk [vmem:[%s217 + $0x98] sm:$0xff] %vm667, %v761
        %794 = vst.msk [vmem:[%s217 + $0xa0] sm:$0xff] %vm667, %v762
        %795 = vst.msk [vmem:[%s217 + $0xa8] sm:$0xff] %vm667, %v763
        %796 = vst.msk [vmem:[%s217 + $0xb0] sm:$0xff] %vm667, %v764
        %797 = vst.msk [vmem:[%s217 + $0xb8] sm:$0xff] %vm667, %v765
        %798 = vst.msk [vmem:[%s217 + $0xc0] sm:$0xff] %vm667, %v766
        %799 = vst.msk [vmem:[%s217 + $0xc8] sm:$0xff] %vm667, %v767
        %800 = vst.msk [vmem:[%s217 + $0xd0] sm:$0xff] %vm667, %v768
        %801 = vst.msk [vmem:[%s217 + $0xd8] sm:$0xff] %vm667, %v769
        %802 = vst.msk [vmem:[%s217 + $0xe0] sm:$0xff] %vm667, %v770
        %803 = vst.msk [vmem:[%s217 + $0xe8] sm:$0xff] %vm667, %v771
        %804 = vst.msk [vmem:[%s217 + $0xf0] sm:$0xff] %vm667, %v772
        %805 = vst.msk [vmem:[%s217 + $0xf8] sm:$0xff] %vm667, %v773
      $region40: #{_conv_var_unif_forward.1} parent=31 // pred_fallthru
        _
      %s806 = smul.u32 32, %s18
      %p807 = scmp.lt.s32.totalorder %s806, 63
      %s808 = scalar_select %p807, %s806, 63
      %s809 = smul.addr %s808, 8
      %s810 = scalar_lea.vmem %s3, %s809
      // Predicated region
      $region41: #{_conv_var_unif_forward.1} parent=31 // pred_check
        %p811 = pneg %p119
      $region42: #{_conv_var_unif_forward.1} parent=31 // pred_check_branch
        %813 = sbr.rel (%p811) target = $region44
      $region43: #{_conv_var_unif_forward.1} parent=31 // pred_region
        %s814 = smul.u32 32, %s18
      $region44: #{_conv_var_unif_forward.1} parent=31 // pred_fallthru
        _
    $region32: #{_conv_var_unif_forward.1} parent=5 // pred_fallthru
      _
    %p815 = scmp.le.s32.totalorder 2, %s9
    // Predicated region
    $region45: #{_conv_var_unif_forward.1} parent=5 // pred_check
      %p816 = pneg %p815
    $region46: #{_conv_var_unif_forward.1} parent=5 // pred_check_branch
      %818 = sbr.rel (%p816) target = $region48
    $region47: #{_conv_var_unif_forward.1} parent=5 // pred_region
      %s819 = ssub.s32 %s9, 2
      // Predicated region
      $region49: #{_conv_var_unif_forward.1} parent=47 // pred_check
        %p820 = pneg %p125
      $region50: #{_conv_var_unif_forward.1} parent=47 // pred_check_branch
        %822 = sbr.rel (%p820) target = $region52
      $region51: #{_conv_var_unif_forward.1} parent=47 // pred_region
        %s823 = smul.u32 32, %s20
        %p824 = scmp.lt.s32.totalorder %s823, 63
        %s825 = scalar_select %p824, %s823, 63
        %s826 = smul.addr %s825, 8
        %s827 = scalar_lea.vmem %s3, %s826
      $region52: #{_conv_var_unif_forward.1} parent=47 // pred_fallthru
        _
    $region48: #{_conv_var_unif_forward.1} parent=5 // pred_fallthru
      _
  $region6: #{_conv_var_unif_forward.1} parent=0 // loop_footer
    %s13 = sadd.s32 1, %s9
  $region7: #{_conv_var_unif_forward.1} parent=0 // loop_footer_branch
    %8 = sbr.rel target = $region3
  $region8: #{_conv_var_unif_forward.1} parent=0 // loop_exit
    _

</llo_original>
